<compile_context>
chip_gen: v6e
topology: v6e:2x2x1
jax: 0.10.0
libtpu: 0.0.40
codegen_flags: <defaults>
</compile_context>

<pallas_src>
import functools

import jax
import jax.numpy as jnp
from jax.experimental import pallas as pl
from jax.experimental.pallas import tpu as pltpu

H1 = 64
H2 = 32
OUT = 1


def _mlp_kernel(x_ref, w1_ref, b1_ref, w2_ref, b2_ref, w3_ref, b3_ref, o_ref):
    # x_ref: (TB, D) f32 batch-major block.  Cast to bf16 in-kernel (VPU work, no extra
    # HBM pass) so the matmuls are single-pass bf16 MXU ops with f32 accumulation.
    x_bf = x_ref[...].astype(jnp.bfloat16)

    # Layer 1 (D -> 64), feature-major: h1 (H1, TB) = W1 (H1, D) contracted with
    # x (TB, D) over D — the q @ k.T pattern — so bias/ReLU are lane-dense over batch.
    h1 = jax.lax.dot_general(
        w1_ref[...], x_bf, (((1,), (1,)), ((), ())),
        preferred_element_type=jnp.float32,
    )
    h1 = jnp.maximum(h1 + b1_ref[...], 0.0)          # Dropout(0.2) -> identity at eval

    # Layer 2 (64 -> 32): h2 (H2, TB) = W2 (H2, H1) @ h1, bf16 operands, f32 accumulate.
    h2 = jnp.dot(w2_ref[...], h1.astype(jnp.bfloat16),
                 preferred_element_type=jnp.float32)
    h2 = jnp.maximum(h2 + b2_ref[...], 0.0)          # Dropout(0.2) -> identity at eval

    # Layer 3 (32 -> 1) + Sigmoid, done on VPU/XLU instead of an M=1 MXU matmul:
    # broadcast-multiply by the (H2, 1) w3 column, reduce the 32 sublanes.
    z = jnp.sum(h2 * w3_ref[...], axis=0, keepdims=True) + b3_ref[...]
    o_ref[...] = jax.nn.sigmoid(z).astype(o_ref.dtype)


def _round_up(n, m):
    return ((n + m - 1) // m) * m


def _pick_block_b(batch, d, requested):
    # Per-row live VMEM: double-buffered f32 x tile, in-kernel bf16 x copy, f32 h1/h2
    # (+ bf16 h1 for the second matmul), double-buffered lane-dense output row, slack.
    per_row = 2 * d * 4 + 2 * d + 4 * (H1 + H2) + 2 * H1 + 2 * 4 + 16
    budget = 16 * 1024 * 1024           # safe on v5e/v6e (128 MiB) and v7x (64 MiB) VMEM
    cap = max(128, (budget // per_row) // 128 * 128)
    bb = max(8, min(int(requested), cap))
    if batch > 256:
        # Keep at least 2 grid blocks for mid/large batches so the "parallel" grid axis
        # can shard across both TensorCores on v7x (and bound tail-padding waste).
        bb = min(bb, _round_up(pl.cdiv(batch, 2), 128))
    if bb >= batch:
        # Whole batch fits in one tile -> single grid step.
        return _round_up(batch, 8)
    # Multiple grid steps: keep the lane-dense output block a multiple of 128 lanes.
    return max(128, (bb // 128) * 128)


@functools.partial(jax.jit, static_argnames=("block_b",))
def scheduling_nn_forward(x, params, block_b=8192):
    """x: (B, D) float32. params: dict of w1,b1,w2,b2,w3,b3. Returns (B, 1) float32."""
    B, D = x.shape
    bb = _pick_block_b(B, D, block_b)
    num_blocks = pl.cdiv(B, bb)
    padded_b = num_blocks * bb

    # Weights for the MXU as bf16 (tiny arrays; f32 master copies kept in params).
    w1 = params["w1"].astype(jnp.bfloat16)   # (H1, D)  PyTorch (out, in) layout
    w2 = params["w2"].astype(jnp.bfloat16)   # (H2, H1)
    b1 = params["b1"]                        # (H1, 1)  f32
    b2 = params["b2"]                        # (H2, 1)  f32
    w3 = params["w3"]                        # (H2, 1)  f32 (used on VPU, stays f32)
    b3 = params["b3"]                        # (1, 1)   f32

    # Explicit scoped-VMEM allowance; capped at 48 MiB so v7x (64 MiB physical) keeps
    # headroom for compiler scratch.
    weight_bytes = 2 * (D * H1 + H1 * H2) + 4 * (H1 + H2 + H2 + 1)
    est = (2 * bb * D * 4                    # double-buffered f32 x tiles
           + bb * D * 2                      # in-kernel bf16 x copy
           + 2 * bb * 4                      # double-buffered lane-dense output rows
           + bb * (H1 + H2) * 4 + bb * H1 * 2  # f32 h1/h2 + bf16 h1
           + 2 * weight_bytes)
    vmem_limit = int(min(48 * 1024 * 1024, max(16 * 1024 * 1024, 2 * est)))

    out_row = pl.pallas_call(
        _mlp_kernel,
        out_shape=jax.ShapeDtypeStruct((1, padded_b), jnp.float32),
        grid_spec=pltpu.PrefetchScalarGridSpec(
            num_scalar_prefetch=0,
            grid=(num_blocks,),
            in_specs=[
                pl.BlockSpec((bb, D), lambda i: (i, 0)),    # x block over batch
                pl.BlockSpec((H1, D), lambda i: (0, 0)),    # w1 (full, resident)
                pl.BlockSpec((H1, 1), lambda i: (0, 0)),    # b1 column
                pl.BlockSpec((H2, H1), lambda i: (0, 0)),   # w2
                pl.BlockSpec((H2, 1), lambda i: (0, 0)),    # b2 column
                pl.BlockSpec((H2, 1), lambda i: (0, 0)),    # w3 column
                pl.BlockSpec((1, 1), lambda i: (0, 0)),     # b3
            ],
            out_specs=pl.BlockSpec((1, bb), lambda i: (0, i)),  # lane-dense output row
        ),
        compiler_params=pltpu.CompilerParams(
            dimension_semantics=("parallel",),
            vmem_limit_bytes=vmem_limit,
        ),
    )(x, w1, b1, w2, b2, w3, b3)

    # Drop tile padding and restore the module's (B, 1) output shape.
    return out_row.reshape(-1)[:B].reshape(B, OUT)


def init_params(key, input_size):
    """Deterministic init mirroring nn.Linear default (uniform(+-1/sqrt(fan_in)))."""
    keys = jax.random.split(key, 6)

    def linear(kw, kb, fan_in, fan_out):
        bound = 1.0 / jnp.sqrt(float(fan_in))
        w = jax.random.uniform(kw, (fan_out, fan_in), jnp.float32, -bound, bound)
        b = jax.random.uniform(kb, (fan_out, 1), jnp.float32, -bound, bound)
        return w, b

    w1, b1 = linear(keys[0], keys[1], input_size, H1)   # (64, D), (64, 1)
    w2, b2 = linear(keys[2], keys[3], H1, H2)            # (32, 64), (32, 1)
    w3, b3 = linear(keys[4], keys[5], H2, OUT)            # (1, 32), (1, 1)
    return {"w1": w1, "b1": b1, "w2": w2, "b2": b2,
            "w3": w3.T, "b3": b3}                          # w3 stored as (32, 1) column


def reference_forward(x, params):
    """Pure-JAX f32 reference of the PyTorch forward (eval mode), high-precision matmuls."""
    hp = jax.lax.Precision.HIGHEST
    h = jnp.maximum(jnp.dot(x, params["w1"].T, precision=hp) + params["b1"].T, 0.0)
    h = jnp.maximum(jnp.dot(h, params["w2"].T, precision=hp) + params["b2"].T, 0.0)
    z = jnp.dot(h, params["w3"], precision=hp) + params["b3"].T
    return jax.nn.sigmoid(z)


if __name__ == "__main__":
    key = jax.random.PRNGKey(0)
    k_x1, k_x2, k_p = jax.random.split(key, 3)

    input_size = 16
    params = init_params(k_p, input_size)

    # Case 1: small batch, single tile (the toy shape implied by the module).
    x1 = jax.random.normal(k_x1, (8, input_size), jnp.float32)
    out1 = jax.block_until_ready(scheduling_nn_forward(x1, params))
    ref1 = reference_forward(x1, params)
    assert out1.shape == (8, 1), out1.shape
    err1 = float(jnp.max(jnp.abs(out1 - ref1)))
    assert err1 < 5e-3, f"case1 max abs err = {err1}"

    # Case 2: multi-tile grid with a ragged last block (exercises the lane-dense
    # output path, 2-block v7x sharding rule, and batch padding/slicing).
    x2 = jax.random.normal(k_x2, (300, input_size), jnp.float32)
    out2 = jax.block_until_ready(scheduling_nn_forward(x2, params, block_b=8192))
    ref2 = reference_forward(x2, params)
    assert out2.shape == (300, 1), out2.shape
    err2 = float(jnp.max(jnp.abs(out2 - ref2)))
    assert err2 < 5e-3, f"case2 max abs err = {err2}"

    print("KERNEL_OK")
</pallas_src>

<mosaic_0001>
module attributes {stable_mosaic.version = 11 : i64} {
  func.func @_mlp_kernel(%arg0: i32, %arg1: memref<8x16xf32, #tpu.memory_space<vmem>>, %arg2: memref<64x16xbf16, #tpu.memory_space<vmem>>, %arg3: memref<64x1xf32, #tpu.memory_space<vmem>>, %arg4: memref<32x64xbf16, #tpu.memory_space<vmem>>, %arg5: memref<32x1xf32, #tpu.memory_space<vmem>>, %arg6: memref<32x1xf32, #tpu.memory_space<vmem>>, %arg7: memref<1x1xf32, #tpu.memory_space<vmem>>, %arg8: memref<1x8xf32, #tpu.memory_space<vmem>>) attributes {dimension_semantics = [#tpu.dimension_semantics<parallel>], iteration_bounds = array<i64: 1>, scalar_prefetch = 0 : i64, scratch_operands = 0 : i64, tpu.core_type = #tpu.core_type<tc>, window_params = [{transform_indices = @transform_0, window_bounds = array<i64: 8, 16>}, {pipeline_mode = #tpu.pipeline_mode<synchronous>, transform_indices = @transform_1, window_bounds = array<i64: 64, 16>}, {pipeline_mode = #tpu.pipeline_mode<synchronous>, transform_indices = @transform_2, window_bounds = array<i64: 64, 1>}, {pipeline_mode = #tpu.pipeline_mode<synchronous>, transform_indices = @transform_3, window_bounds = array<i64: 32, 64>}, {pipeline_mode = #tpu.pipeline_mode<synchronous>, transform_indices = @transform_4, window_bounds = array<i64: 32, 1>}, {pipeline_mode = #tpu.pipeline_mode<synchronous>, transform_indices = @transform_5, window_bounds = array<i64: 32, 1>}, {pipeline_mode = #tpu.pipeline_mode<synchronous>, transform_indices = @transform_6, window_bounds = array<i64: 1, 1>}, {transform_indices = @transform_7, window_bounds = array<i64: 1, 8>}]} {
    %c0 = arith.constant 0 : index
    %c0_0 = arith.constant 0 : index
    %0 = vector.load %arg1[%c0, %c0_0] : memref<8x16xf32, #tpu.memory_space<vmem>>, vector<8x16xf32>
    %1 = arith.truncf %0 : vector<8x16xf32> to vector<8x16xbf16>
    %c0_1 = arith.constant 0 : index
    %c0_2 = arith.constant 0 : index
    %2 = vector.load %arg2[%c0_1, %c0_2] : memref<64x16xbf16, #tpu.memory_space<vmem>>, vector<64x16xbf16>
    %cst = arith.constant dense<0.000000e+00> : vector<64x8xf32>
    %3 = tpu.matmul %2, %1, %cst {dimension_numbers = #tpu.dot_dimension_numbers<[1], [1], [0], [0], [0, 0, 1, 0], [], []>} : vector<64x16xbf16>, vector<8x16xbf16>, vector<64x8xf32> -> vector<64x8xf32>
    %c0_3 = arith.constant 0 : index
    %c0_4 = arith.constant 0 : index
    %4 = vector.load %arg3[%c0_3, %c0_4] : memref<64x1xf32, #tpu.memory_space<vmem>>, vector<64x1xf32>
    %5 = vector.broadcast %4 : vector<64x1xf32> to vector<64x8xf32>
    %6 = arith.addf %3, %5 : vector<64x8xf32>
    %cst_5 = arith.constant 0.000000e+00 : f32
    %7 = vector.broadcast %cst_5 : f32 to vector<64x8xf32>
    %8 = arith.maximumf %6, %7 : vector<64x8xf32>
    %c0_6 = arith.constant 0 : index
    %c0_7 = arith.constant 0 : index
    %9 = vector.load %arg4[%c0_6, %c0_7] : memref<32x64xbf16, #tpu.memory_space<vmem>>, vector<32x64xbf16>
    %10 = arith.truncf %8 : vector<64x8xf32> to vector<64x8xbf16>
    %cst_8 = arith.constant dense<0.000000e+00> : vector<32x8xf32>
    %11 = tpu.matmul %9, %10, %cst_8 {dimension_numbers = #tpu.dot_dimension_numbers<[1], [0], [0], [1], [0, 0, 1, 1], [], []>} : vector<32x64xbf16>, vector<64x8xbf16>, vector<32x8xf32> -> vector<32x8xf32>
    %c0_9 = arith.constant 0 : index
    %c0_10 = arith.constant 0 : index
    %12 = vector.load %arg5[%c0_9, %c0_10] : memref<32x1xf32, #tpu.memory_space<vmem>>, vector<32x1xf32>
    %13 = vector.broadcast %12 : vector<32x1xf32> to vector<32x8xf32>
    %14 = arith.addf %11, %13 : vector<32x8xf32>
    %cst_11 = arith.constant 0.000000e+00 : f32
    %15 = vector.broadcast %cst_11 : f32 to vector<32x8xf32>
    %16 = arith.maximumf %14, %15 : vector<32x8xf32>
    %c0_12 = arith.constant 0 : index
    %c0_13 = arith.constant 0 : index
    %17 = vector.load %arg6[%c0_12, %c0_13] : memref<32x1xf32, #tpu.memory_space<vmem>>, vector<32x1xf32>
    %18 = vector.broadcast %17 : vector<32x1xf32> to vector<32x8xf32>
    %19 = arith.mulf %16, %18 : vector<32x8xf32>
    %cst_14 = arith.constant dense<0.000000e+00> : vector<8xf32>
    %20 = vector.multi_reduction <add>, %19, %cst_14 [0] : vector<32x8xf32> to vector<8xf32>
    %21 = vector.shape_cast %20 : vector<8xf32> to vector<1x8xf32>
    %c0_15 = arith.constant 0 : index
    %c0_16 = arith.constant 0 : index
    %22 = vector.load %arg7[%c0_15, %c0_16] : memref<1x1xf32, #tpu.memory_space<vmem>>, vector<1x1xf32>
    %23 = vector.broadcast %22 : vector<1x1xf32> to vector<1x8xf32>
    %24 = arith.addf %21, %23 : vector<1x8xf32>
    %25 = arith.negf %24 : vector<1x8xf32>
    %26 = math.exp %25 : vector<1x8xf32>
    %cst_17 = arith.constant 1.000000e+00 : f32
    %27 = vector.broadcast %cst_17 : f32 to vector<1x8xf32>
    %28 = arith.addf %27, %26 : vector<1x8xf32>
    %29 = arith.divf %27, %28 : vector<1x8xf32>
    %c0_18 = arith.constant 0 : index
    %c0_19 = arith.constant 0 : index
    %30 = vector.load %arg8[%c0_18, %c0_19] : memref<1x8xf32, #tpu.memory_space<vmem>>, vector<1x8xf32>
    tpu.vector_store %arg8[%c0_18, %c0_19], %29 {strides = array<i32>} : memref<1x8xf32, #tpu.memory_space<vmem>>, vector<1x8xf32>,
    return
  }
  func.func @transform_0(%arg0: i32) -> (i32, i32) {
    %c0_i32 = arith.constant 0 : i32
    %c0_i32_0 = arith.constant 0 : i32
    return %arg0, %c0_i32 : i32, i32
  }
  func.func @transform_1(%arg0: i32) -> (i32, i32) {
    %c0_i32 = arith.constant 0 : i32
    %c0_i32_0 = arith.constant 0 : i32
    %c0_i32_1 = arith.constant 0 : i32
    return %c0_i32, %c0_i32_0 : i32, i32
  }
  func.func @transform_2(%arg0: i32) -> (i32, i32) {
    %c0_i32 = arith.constant 0 : i32
    %c0_i32_0 = arith.constant 0 : i32
    %c0_i32_1 = arith.constant 0 : i32
    return %c0_i32, %c0_i32_0 : i32, i32
  }
  func.func @transform_3(%arg0: i32) -> (i32, i32) {
    %c0_i32 = arith.constant 0 : i32
    %c0_i32_0 = arith.constant 0 : i32
    %c0_i32_1 = arith.constant 0 : i32
    return %c0_i32, %c0_i32_0 : i32, i32
  }
  func.func @transform_4(%arg0: i32) -> (i32, i32) {
    %c0_i32 = arith.constant 0 : i32
    %c0_i32_0 = arith.constant 0 : i32
    %c0_i32_1 = arith.constant 0 : i32
    return %c0_i32, %c0_i32_0 : i32, i32
  }
  func.func @transform_5(%arg0: i32) -> (i32, i32) {
    %c0_i32 = arith.constant 0 : i32
    %c0_i32_0 = arith.constant 0 : i32
    %c0_i32_1 = arith.constant 0 : i32
    return %c0_i32, %c0_i32_0 : i32, i32
  }
  func.func @transform_6(%arg0: i32) -> (i32, i32) {
    %c0_i32 = arith.constant 0 : i32
    %c0_i32_0 = arith.constant 0 : i32
    %c0_i32_1 = arith.constant 0 : i32
    return %c0_i32, %c0_i32_0 : i32, i32
  }
  func.func @transform_7(%arg0: i32) -> (i32, i32) {
    %c0_i32 = arith.constant 0 : i32
    %c0_i32_0 = arith.constant 0 : i32
    return %c0_i32, %arg0 : i32, i32
  }
}

</mosaic_0001>

<llo_original>
// kernel: scheduling_nn_forward.1
$region0: #{scheduling_nn_forward.1}
  #allocation0 [shape = 'u32[]', space=smem, size = 0x4, offset = 0x4, fixed_abs, tag = 'smem constant byte address 0x4 - core index']
  #allocation1 [shape = 'u32[144,128]{1,0:T(1,128)}', space=vmem, size = 0x12000, scoped, tag = 'internal scratch']
  #allocation2 [shape = 'f32[1,1]{1,0:T(1,128)S(1)}', space=vmem, size = 0x200, scoped, tag = 'scoped memory for scheduling_nn_forward.1']
  %s0 = inlined_call_operand.vmem [shape: f32[8,16], index: 0, kind: input, shape index: {}]
  %s1 = inlined_call_operand.vmem [shape: bf16[64,16], index: 1, kind: input, shape index: {}]
  %s2 = inlined_call_operand.vmem [shape: f32[64,1], index: 2, kind: input, shape index: {}]
  %s3 = inlined_call_operand.vmem [shape: bf16[32,64], index: 3, kind: input, shape index: {}]
  %s4 = inlined_call_operand.vmem [shape: f32[32,1], index: 4, kind: input, shape index: {}]
  %s5 = inlined_call_operand.vmem [shape: f32[32,1], index: 5, kind: input, shape index: {}]
  %s6 = inlined_call_operand.<no memory space> [shape: f32[1,1], index: 6, kind: input, shape index: {}]
  %s7 = inlined_call_operand.hbm [shape: f32[1,8], index: 7, kind: output, shape index: {}]
  %s8 = sld [smem:[#allocation0]]
  $region38: #{scheduling_nn_forward.1} parent=0
    _
  %s10 = ssub.s32 1, %s8
  %s11 = scalar_select 0, %s10, %s8
  %v12 = vstv %s6
  %13 = vst [vmem:[#allocation2] sm:$0x1] %v12
  $region1: #{scheduling_nn_forward.1} parent=0
    #allocation3 [shape = 'u8[512]{0}', space=vmem, size = 0x400, scoped, tag = 'output window, operand 0, single buffered']
    #allocation4 [shape = 's32[1]{0}', space=sflag, size = 0x4, scoped, tag = 'scoped memory for scheduling_nn_forward.1']
    %14 = vsyncpa [#allocation4], 0
    // Predicated region
    $region2: #{scheduling_nn_forward.1} parent=1 // pred_check
      _
    $region3: #{scheduling_nn_forward.1} parent=1 // pred_check_branch
      %16 = sbr.rel (0) target = $region5
    $region4: #{scheduling_nn_forward.1} parent=1 // pred_region
      _
    $region5: #{scheduling_nn_forward.1} parent=1 // pred_fallthru
      _
    // Predicated region
    $region6: #{scheduling_nn_forward.1} parent=1 // pred_check
      _
    $region7: #{scheduling_nn_forward.1} parent=1 // pred_check_branch
      %18 = sbr.rel (0) target = $region9
    $region8: #{scheduling_nn_forward.1} parent=1 // pred_region
      _
    $region9: #{scheduling_nn_forward.1} parent=1 // pred_fallthru
      _
    // Predicated region
    $region10: #{scheduling_nn_forward.1} parent=1 // pred_check
      _
    $region11: #{scheduling_nn_forward.1} parent=1 // pred_check_branch
      %20 = sbr.rel (0) target = $region13
    $region12: #{scheduling_nn_forward.1} parent=1 // pred_region
      _
    $region13: #{scheduling_nn_forward.1} parent=1 // pred_fallthru
      _
    // Predicated region
    $region14: #{scheduling_nn_forward.1} parent=1 // pred_check
      _
    $region15: #{scheduling_nn_forward.1} parent=1 // pred_check_branch
      %22 = sbr.rel (0) target = $region17
    $region16: #{scheduling_nn_forward.1} parent=1 // pred_region
      _
    $region17: #{scheduling_nn_forward.1} parent=1 // pred_fallthru
      _
    // Predicated region
    $region18: #{scheduling_nn_forward.1} parent=1 // pred_check
      _
    $region19: #{scheduling_nn_forward.1} parent=1 // pred_check_branch
      %24 = sbr.rel (0) target = $region21
    $region20: #{scheduling_nn_forward.1} parent=1 // pred_region
      _
    $region21: #{scheduling_nn_forward.1} parent=1 // pred_fallthru
      _
    // Predicated region
    $region22: #{scheduling_nn_forward.1} parent=1 // pred_check
      _
    $region23: #{scheduling_nn_forward.1} parent=1 // pred_check_branch
      %26 = sbr.rel (0) target = $region25
    $region24: #{scheduling_nn_forward.1} parent=1 // pred_region
      _
    $region25: #{scheduling_nn_forward.1} parent=1 // pred_fallthru
      _
    // Predicated region
    $region26: #{scheduling_nn_forward.1} parent=1 // pred_check
      _
    $region27: #{scheduling_nn_forward.1} parent=1 // pred_check_branch
      %28 = sbr.rel (0) target = $region29
    $region28: #{scheduling_nn_forward.1} parent=1 // pred_region
      _
    $region29: #{scheduling_nn_forward.1} parent=1 // pred_fallthru
      _
    %v30 = vld [vmem:[%s0] sm:$0xff]
    %v31 = vpack.c.bf16 %v30, %v30
    %v32 = vld [vmem:[%s1] sm:$0xf]
    %v33 = vld [vmem:[%s1 + $0x4] sm:$0xf]
    %v34 = vld [vmem:[%s1 + $0x8] sm:$0xf]
    %v35 = vld [vmem:[%s1 + $0xc] sm:$0xf]
    %v36 = vld [vmem:[%s1 + $0x10] sm:$0xf]
    %v37 = vld [vmem:[%s1 + $0x14] sm:$0xf]
    %v38 = vld [vmem:[%s1 + $0x18] sm:$0xf]
    %v39 = vld [vmem:[%s1 + $0x1c] sm:$0xf]
    %v40 = vld [vmem:[%s2] sm:$0xff]
    %v41 = vld [vmem:[%s2 + $0x8] sm:$0xff]
    %v42 = vld [vmem:[%s2 + $0x10] sm:$0xff]
    %v43 = vld [vmem:[%s2 + $0x18] sm:$0xff]
    %v44 = vld [vmem:[%s2 + $0x20] sm:$0xff]
    %v45 = vld [vmem:[%s2 + $0x28] sm:$0xff]
    %v46 = vld [vmem:[%s2 + $0x30] sm:$0xff]
    %v47 = vld [vmem:[%s2 + $0x38] sm:$0xff]
    %49 = vset.pattern.permute.xlu0 0
    %50 = vperm.xlu0 %49, %v40
    %v51 = vpop.permute.xlu0 %50
    %54 = vset.pattern.permute.xlu0 0
    %55 = vperm.xlu0 %54, %v41
    %v56 = vpop.permute.xlu0 %55
    %59 = vset.pattern.permute.xlu0 0
    %60 = vperm.xlu0 %59, %v42
    %v61 = vpop.permute.xlu0 %60
    %64 = vset.pattern.permute.xlu0 0
    %65 = vperm.xlu0 %64, %v43
    %v66 = vpop.permute.xlu0 %65
    %69 = vset.pattern.permute.xlu0 0
    %70 = vperm.xlu0 %69, %v44
    %v71 = vpop.permute.xlu0 %70
    %74 = vset.pattern.permute.xlu0 0
    %75 = vperm.xlu0 %74, %v45
    %v76 = vpop.permute.xlu0 %75
    %79 = vset.pattern.permute.xlu0 0
    %80 = vperm.xlu0 %79, %v46
    %v81 = vpop.permute.xlu0 %80
    %84 = vset.pattern.permute.xlu0 0
    %85 = vperm.xlu0 %84, %v47
    %v86 = vpop.permute.xlu0 %85
    %v96 = vunpack.c.l.b16 %v32
    %v97 = vunpack.c.l.b16 %v33
    %v98 = vunpack.c.l.b16 %v34
    %v99 = vunpack.c.l.b16 %v35
    %v100 = vunpack.c.l.b16 %v36
    %v101 = vunpack.c.l.b16 %v37
    %v102 = vunpack.c.l.b16 %v38
    %v103 = vunpack.c.l.b16 %v39
    %v104 = vpack.c.b16 %v97, %v96
    %v105 = vpack.c.b16 %v99, %v98
    %v106 = vpack.c.b16 %v101, %v100
    %v107 = vpack.c.b16 %v103, %v102
    %vm108 = vcmask 130048
    %v110 = vsel %vm108, %v104, 0
    %v113 = vsel %vm108, %v105, 0
    %v116 = vsel %vm108, %v106, 0
    %v119 = vsel %vm108, %v107, 0
    %v122 = vsel %vm108, %v31, 0
    %124 = vmatprep.subr.bf16.mxu0 0
    %125 = vmatpush1.bf16.xpose.msra.mxu0 0
    %126 = vmatprep.subr.bf16.mxu0 0
    %127 = vmatpush1.bf16.xpose.msra.mxu0 0
    %128 = vmatprep.subr.bf16.mxu0 0
    %129 = vmatpush1.bf16.xpose.msra.mxu0 0
    %130 = vmatprep.subr.bf16.mxu0 0
    %131 = vmatpush1.bf16.xpose.msra.mxu0 0
    %132 = vmatprep.subr.bf16.mxu0 0
    %133 = vmatpush1.bf16.xpose.msra.mxu0 0
    %134 = vmatprep.subr.bf16.mxu0 0
    %135 = vmatpush1.bf16.xpose.msra.mxu0 0
    %136 = vmatprep.subr.bf16.mxu0 0
    %137 = vmatpush1.bf16.xpose.msra.mxu0 0
    %138 = vmatprep.subr.bf16.mxu0 0
    %139 = vmatpush1.bf16.xpose.msra.mxu0 %v122
    %140 = vmatprep.subr.bf16.mxu0 0
    %141 = vmatpush2.bf16.xpose.msra.mxu0 0
    %142 = vmatprep.subr.bf16.mxu0 0
    %143 = vmatpush2.bf16.xpose.msra.mxu0 0
    %144 = vmatprep.subr.bf16.mxu0 0
    %145 = vmatpush2.bf16.xpose.msra.mxu0 0
    %146 = vmatprep.subr.bf16.mxu0 0
    %147 = vmatpush2.bf16.xpose.msra.mxu0 0
    %148 = vmatprep.subr.bf16.mxu0 0
    %149 = vmatpush2.bf16.xpose.msra.mxu0 0
    %150 = vmatprep.subr.bf16.mxu0 0
    %151 = vmatpush2.bf16.xpose.msra.mxu0 0
    %152 = vmatprep.subr.bf16.mxu0 0
    %153 = vmatpush2.bf16.xpose.msra.mxu0 0
    %154 = vmatprep.subr.bf16.mxu0 0
    %155 = vmatpush2.bf16.xpose.msra.mxu0 0
    %156 = vmatprep.mubr.bf16.mxu0 0
    %157 = vmatmul.mubr.bf16.gmra.mxu0 %v110
    %v158 = vpop.f32.mrf.mxu0
    %v159 = vadd.f32 %v51, %v158
    %v160 = vpop.f32.mrf.mxu0
    %v161 = vpop.f32.mrf.mxu0
    %v162 = vadd.f32 %v56, %v161
    %v163 = vpop.f32.mrf.mxu0
    %164 = vmatprep.mubr.bf16.mxu0 0
    %165 = vmatmul.mubr.bf16.gmra.mxu0 %v113
    %v166 = vpop.f32.mrf.mxu0
    %v167 = vadd.f32 %v61, %v166
    %v168 = vpop.f32.mrf.mxu0
    %v169 = vpop.f32.mrf.mxu0
    %v170 = vadd.f32 %v66, %v169
    %v171 = vpop.f32.mrf.mxu0
    %172 = vmatprep.mubr.bf16.mxu0 0
    %173 = vmatmul.mubr.bf16.gmra.mxu0 %v116
    %v174 = vpop.f32.mrf.mxu0
    %v175 = vadd.f32 %v71, %v174
    %v176 = vpop.f32.mrf.mxu0
    %v177 = vpop.f32.mrf.mxu0
    %v178 = vadd.f32 %v76, %v177
    %v179 = vpop.f32.mrf.mxu0
    %180 = vmatprep.mubr.bf16.mxu0 0
    %181 = vmatmul.mubr.bf16.gmra.mxu0 %v119
    %v182 = vpop.f32.mrf.mxu0
    %v183 = vadd.f32 %v81, %v182
    %v184 = vpop.f32.mrf.mxu0
    %v185 = vpop.f32.mrf.mxu0
    %v186 = vadd.f32 %v86, %v185
    %v187 = vpop.f32.mrf.mxu0
    %188 = vdwg.mxu0
    %v189 = vmax.f32 %v159, 0.0
    %v190 = vmax.f32 %v162, 0.0
    %v191 = vmax.f32 %v167, 0.0
    %v192 = vmax.f32 %v170, 0.0
    %v193 = vmax.f32 %v175, 0.0
    %v194 = vmax.f32 %v178, 0.0
    %v195 = vmax.f32 %v183, 0.0
    %v196 = vmax.f32 %v186, 0.0
    %v197 = vld [vmem:[%s3] sm:$0xf]
    %v198 = vld [vmem:[%s3 + $0x4] sm:$0xf]
    %v199 = vld [vmem:[%s3 + $0x8] sm:$0xf]
    %v200 = vld [vmem:[%s3 + $0xc] sm:$0xf]
    %v201 = vpack.c.bf16 %v190, %v189
    %v202 = vpack.c.bf16 %v192, %v191
    %v203 = vpack.c.bf16 %v194, %v193
    %v204 = vpack.c.bf16 %v196, %v195
    %v205 = vld [vmem:[%s4] sm:$0xff]
    %v206 = vld [vmem:[%s4 + $0x8] sm:$0xff]
    %v207 = vld [vmem:[%s4 + $0x10] sm:$0xff]
    %v208 = vld [vmem:[%s4 + $0x18] sm:$0xff]
    %210 = vset.pattern.permute.xlu0 0
    %211 = vperm.xlu0 %210, %v205
    %v212 = vpop.permute.xlu0 %211
    %215 = vset.pattern.permute.xlu0 0
    %216 = vperm.xlu0 %215, %v206
    %v217 = vpop.permute.xlu0 %216
    %220 = vset.pattern.permute.xlu0 0
    %221 = vperm.xlu0 %220, %v207
    %v222 = vpop.permute.xlu0 %221
    %225 = vset.pattern.permute.xlu0 0
    %226 = vperm.xlu0 %225, %v208
    %v227 = vpop.permute.xlu0 %226
    %v233 = vunpack.c.l.b16 %v197
    %v234 = vunpack.c.l.b16 %v198
    %v235 = vunpack.c.l.b16 %v199
    %v236 = vunpack.c.l.b16 %v200
    %v237 = vpack.c.b16 %v234, %v233
    %v238 = vpack.c.b16 %v236, %v235
    %vm239 = vcmask 523264
    %v241 = vsel %vm239, %v237, 0
    %v244 = vsel %vm239, %v238, 0
    %246 = vmatprep.subr.bf16.mxu0 0
    %247 = vmatpush1.bf16.msra.mxu0 0
    %248 = vmatprep.subr.bf16.mxu0 0
    %249 = vmatpush1.bf16.msra.mxu0 0
    %250 = vmatprep.subr.bf16.mxu0 0
    %251 = vmatpush1.bf16.msra.mxu0 0
    %252 = vmatprep.subr.bf16.mxu0 0
    %253 = vmatpush1.bf16.msra.mxu0 0
    %254 = vmatprep.subr.bf16.mxu0 0
    %255 = vmatpush1.bf16.msra.mxu0 %v204
    %256 = vmatprep.subr.bf16.mxu0 0
    %257 = vmatpush1.bf16.msra.mxu0 %v203
    %258 = vmatprep.subr.bf16.mxu0 0
    %259 = vmatpush1.bf16.msra.mxu0 %v202
    %260 = vmatprep.subr.bf16.mxu0 0
    %261 = vmatpush1.bf16.msra.mxu0 %v201
    %262 = vmatprep.subr.bf16.mxu0 0
    %263 = vmatpush2.bf16.msra.mxu0 0
    %264 = vmatprep.subr.bf16.mxu0 0
    %265 = vmatpush2.bf16.msra.mxu0 0
    %266 = vmatprep.subr.bf16.mxu0 0
    %267 = vmatpush2.bf16.msra.mxu0 0
    %268 = vmatprep.subr.bf16.mxu0 0
    %269 = vmatpush2.bf16.msra.mxu0 0
    %270 = vmatprep.subr.bf16.mxu0 0
    %271 = vmatpush2.bf16.msra.mxu0 0
    %272 = vmatprep.subr.bf16.mxu0 0
    %273 = vmatpush2.bf16.msra.mxu0 0
    %274 = vmatprep.subr.bf16.mxu0 0
    %275 = vmatpush2.bf16.msra.mxu0 0
    %276 = vmatprep.subr.bf16.mxu0 0
    %277 = vmatpush2.bf16.msra.mxu0 0
    %278 = vmatprep.mubr.bf16.mxu0 0
    %279 = vmatmul.mubr.bf16.gmra.mxu0 %v241
    %v280 = vpop.f32.mrf.mxu0
    %v281 = vadd.f32 %v212, %v280
    %v282 = vpop.f32.mrf.mxu0
    %v283 = vpop.f32.mrf.mxu0
    %v284 = vadd.f32 %v217, %v283
    %v285 = vpop.f32.mrf.mxu0
    %286 = vmatprep.mubr.bf16.mxu0 0
    %287 = vmatmul.mubr.bf16.gmra.mxu0 %v244
    %v288 = vpop.f32.mrf.mxu0
    %v289 = vadd.f32 %v222, %v288
    %v290 = vpop.f32.mrf.mxu0
    %v291 = vpop.f32.mrf.mxu0
    %v292 = vadd.f32 %v227, %v291
    %v293 = vpop.f32.mrf.mxu0
    %294 = vdwg.mxu0
    %v295 = vmax.f32 %v281, 0.0
    %v296 = vmax.f32 %v284, 0.0
    %v297 = vmax.f32 %v289, 0.0
    %v298 = vmax.f32 %v292, 0.0
    %v299 = vld [vmem:[%s5] sm:$0xff]
    %v300 = vld [vmem:[%s5 + $0x8] sm:$0xff]
    %v301 = vld [vmem:[%s5 + $0x10] sm:$0xff]
    %v302 = vld [vmem:[%s5 + $0x18] sm:$0xff]
    %304 = vset.pattern.permute.xlu0 0
    %305 = vperm.xlu0 %304, %v299
    %v306 = vpop.permute.xlu0 %305
    %309 = vset.pattern.permute.xlu0 0
    %310 = vperm.xlu0 %309, %v300
    %v311 = vpop.permute.xlu0 %310
    %314 = vset.pattern.permute.xlu0 0
    %315 = vperm.xlu0 %314, %v301
    %v316 = vpop.permute.xlu0 %315
    %319 = vset.pattern.permute.xlu0 0
    %320 = vperm.xlu0 %319, %v302
    %v321 = vpop.permute.xlu0 %320
    %v323 = vmul.f32 %v295, %v306
    %v324 = vmul.f32 %v296, %v311
    %v325 = vmul.f32 %v297, %v316
    %v326 = vmul.f32 %v298, %v321
    %vm327 = vcmask 64512
    %v328 = vsel %vm327, %v323, 0.0
    %v329 = vsel %vm327, %v324, 0.0
    %v330 = vadd.f32 %v328, %v329
    %v331 = vsel %vm327, %v325, 0.0
    %v332 = vadd.f32 %v330, %v331
    %v333 = vsel %vm327, %v326, 0.0
    %v334 = vadd.f32 %v332, %v333
    %v335 = vrot.slane %v334, 4
    %v336 = vadd.f32 %v334, %v335
    %v337 = vrot.slane %v336, 2
    %v338 = vadd.f32 %v336, %v337
    %v339 = vrot.slane %v338, 1
    %v340 = vadd.f32 %v338, %v339
    %v341 = vld [vmem:[#allocation2] sm:$0x1]
    %343 = vset.pattern.permute.xlu0 0
    %344 = vperm.xlu0 %343, %v341
    %v345 = vpop.permute.xlu0 %344
    %v347 = vlaneseq
    %v348 = vshrl.u32 %v347, 7
    %v349 = vsub.s32 0, %v348
    %v350 = vrot.slane %v345, %v349
    %v351 = vadd.f32 %v340, %v350
    %v352 = vxor.u32 %v351, 2147483648
    %v353 = vmul.f32 %v352, 1.442695
    %v354 = vpow.pop %v353
    %v355 = vadd.f32 %v354, 1.0
    %v356 = vrcp.pop %v355
    %v357 = vmul.f32 1.0, %v356
    %vm358 = vcmask 57344
    %359 = vst.msk [vmem:[#allocation3] sm:$0x1] %vm358, %v357
    // Predicated region
    $region30: #{scheduling_nn_forward.1} parent=1 // pred_check
      _
    $region31: #{scheduling_nn_forward.1} parent=1 // pred_check_branch
      %361 = sbr.rel (0) target = $region33
    $region32: #{scheduling_nn_forward.1} parent=1 // pred_region
      %s363 = ssub.s32 16, 16
      %364 = vsyncadd [#allocation4], %s363
      %s366 = sshll.u32 [#allocation3], 4
      %s367 = int_to_ptr.vmem [resolvable:$true] %s366
      %369 = dma.vmem_to_hbm [thread:$0]  %s367, 16, %s7, [#allocation4]
    $region33: #{scheduling_nn_forward.1} parent=1 // pred_fallthru
      _
    // Predicated region
    $region34: #{scheduling_nn_forward.1} parent=1 // pred_check
      _
    $region35: #{scheduling_nn_forward.1} parent=1 // pred_check_branch
      %371 = sbr.rel (0) target = $region37
    $region36: #{scheduling_nn_forward.1} parent=1 // pred_region
      %372 = dma.done [#allocation4], 16
    $region37: #{scheduling_nn_forward.1} parent=1 // pred_fallthru
      _
    %373 = vsyncpa [#allocation4], 1

</llo_original>
